<compile_context>
chip_gen: v5e
topology: v5e:2x2
jax: 0.10.0
libtpu: 0.0.40
codegen_flags: <defaults>
</compile_context>

<pallas_src>
import functools

import jax
import jax.numpy as jnp
from jax.experimental import pallas as pl
from jax.experimental.pallas import tpu as pltpu


def _round_up(x, m):
    return ((x + m - 1) // m) * m


def _cdiv(a, b):
    return -(-a // b)


# ---------------------------------------------------------------------------
# Fused MLP kernel: whole network for one block of batch rows.
# ---------------------------------------------------------------------------
def _mlp_kernel(x_ref, *refs, n_layers, activation):
    # x_ref : [BM, P_in]                 (P_in multiple of 128)
    # refs  : (w0, b0, w1, b1, ..., o_ref)
    #   w_l : [P_in_l, P_out_l]          (per-layer padded, VMEM-resident)
    #   b_l : [1, P_out_l]   f32
    #   o   : [BM, P_out_last] f32       (lane-dense; sliced in the wrapper)
    o_ref = refs[-1]
    h = x_ref[...].astype(jnp.float32)
    for l in range(n_layers):                       # static unrolled layer loop
        w_ref = refs[2 * l]
        b_ref = refs[2 * l + 1]
        y = jnp.dot(h.astype(w_ref.dtype), w_ref[...],
                    preferred_element_type=jnp.float32)   # MXU, f32 accumulate
        y = y + b_ref[...]                           # f32 bias (broadcast rows)
        if l < n_layers - 1:
            y = activation(y)                        # f32 epilogue (v5e-safe)
        h = y
    o_ref[...] = h.astype(o_ref.dtype)


def _resident_spec(shape):
    """Grid-invariant block: constant index_map, single-buffered if supported."""
    idx = lambda i: (0,) * len(shape)
    if hasattr(pl, "Buffered"):
        try:
            return pl.BlockSpec(shape, idx, pipeline_mode=pl.Buffered(buffer_count=1))
        except TypeError:
            pass
    return pl.BlockSpec(shape, idx)


def _fused_mlp(x_pad, padded_params, out_pad, *, activation, block_rows):
    """x_pad: [B, P_in] (P_in mult of 128). Returns [B, out_pad] f32."""
    B, P_in = x_pad.shape
    L = len(padded_params)

    # Batch tiling: minimize pad overshoot, keep BM a multiple of 8.
    min_rows = 8 if x_pad.dtype.itemsize >= 4 else 16
    rows = max(int(block_rows), min_rows)
    n_blocks = max(1, _cdiv(B, rows))
    BM = _round_up(_cdiv(B, n_blocks), min_rows)
    B_pad = _round_up(B, BM)
    if B_pad != B:
        x_pad = jnp.pad(x_pad, ((0, B_pad - B), (0, 0)))

    in_specs = [pl.BlockSpec((BM, P_in), lambda i: (i, 0))]
    flat_params = []
    for w, b in padded_params:
        in_specs.append(_resident_spec(w.shape))
        in_specs.append(_resident_spec(b.shape))
        flat_params.extend((w, b))

    # Explicit scoped-VMEM budget from the actual working set (+ headroom).
    param_bytes = sum(int(a.size) * a.dtype.itemsize for a in flat_params)
    max_p = max([P_in] + [w.shape[1] for w, _ in padded_params])
    act_bytes = 2 * BM * P_in * x_pad.dtype.itemsize + 2 * BM * out_pad * 4
    live_bytes = 3 * BM * max_p * 4
    vmem_limit = int(min(64 << 20,
                         max(32 << 20,
                             2 * (2 * param_bytes + act_bytes + live_bytes))))

    kernel = functools.partial(_mlp_kernel, n_layers=L, activation=activation)
    out = pl.pallas_call(
        kernel,
        out_shape=jax.ShapeDtypeStruct((B_pad, out_pad), jnp.float32),
        grid_spec=pltpu.PrefetchScalarGridSpec(
            num_scalar_prefetch=0,
            grid=(B_pad // BM,),
            in_specs=in_specs,
            out_specs=pl.BlockSpec((BM, out_pad), lambda i: (i, 0)),
        ),
        compiler_params=pltpu.CompilerParams(
            dimension_semantics=("parallel",),
            vmem_limit_bytes=vmem_limit),
    )(x_pad, *flat_params)
    return out[:B]


# ---------------------------------------------------------------------------
# One-time parameter packing + jitted forward factory (hoisted off hot path).
# ---------------------------------------------------------------------------
def pack_params(params, *, weight_dtype=jnp.bfloat16, lane_multiple=128):
    """Per-layer zero-padding to multiples of `lane_multiple`.

    Zero padding is exact: padded input lanes hit zero weight rows, padded
    output lanes get 0 + 0 bias (activation(0) = 0 for ReLU-like fns), and the
    wrapper slices the true outDim back off.
    """
    padded = []
    for w, b in params:
        fi, fo = w.shape
        pi, po = _round_up(fi, lane_multiple), _round_up(fo, lane_multiple)
        wp = jnp.pad(w, ((0, pi - fi), (0, po - fo))).astype(weight_dtype)
        bp = jnp.pad(b, (0, po - fo)).astype(jnp.float32).reshape(1, po)
        padded.append((wp, bp))
    return padded


def make_forward(params, *, activation=None, weight_dtype=jnp.bfloat16,
                 block_rows=512, lane_multiple=128):
    """Packs parameters ONCE and returns a jitted `forward(x)` closure."""
    if activation is None:
        activation = lambda v: jnp.maximum(v, 0.0)          # ReLU default
    padded = pack_params(params, weight_dtype=weight_dtype,
                         lane_multiple=lane_multiple)
    in_dim = params[0][0].shape[0]
    out_dim = params[-1][0].shape[1]
    p_in = padded[0][0].shape[0]
    p_out = padded[-1][0].shape[1]
    n_layers = len(params)

    @jax.jit
    def _forward(x, *flat):
        padded_params = [(flat[2 * l], flat[2 * l + 1]) for l in range(n_layers)]
        x_pad = jnp.pad(x, ((0, 0), (0, p_in - in_dim)))    # f32 input kept f32
        out = _fused_mlp(x_pad, padded_params, p_out,
                         activation=activation, block_rows=block_rows)
        return out[:, :out_dim]

    flat = tuple(a for wb in padded for a in wb)
    return lambda x: _forward(x, *flat)


# ---------------------------------------------------------------------------
# Init + reference + test
# ---------------------------------------------------------------------------
def init_params(key, inDim, hDim, outDim):
    """PyTorch nn.Linear-style init: U[-1/sqrt(fan_in), +1/sqrt(fan_in)]."""
    dims = [inDim] + list(hDim) + [outDim]
    params = []
    for i in range(len(dims) - 1):
        fan_in, fan_out = dims[i], dims[i + 1]
        key, kw, kb = jax.random.split(key, 3)
        bound = 1.0 / (fan_in ** 0.5)
        w = jax.random.uniform(kw, (fan_in, fan_out), jnp.float32, -bound, bound)
        b = jax.random.uniform(kb, (fan_out,), jnp.float32, -bound, bound)
        params.append((w, b))
    return params


def reference_forward(params, x):
    val = x
    for i, (w, b) in enumerate(params):
        val = val @ w + b
        if i != len(params) - 1:
            val = jnp.maximum(val, 0.0)
    return val


if __name__ == "__main__":
    # Net(inDim=32, outDim=16, hDim=[64, 48], activation=ReLU)
    inDim, outDim, hDim = 32, 16, [64, 48]

    key = jax.random.PRNGKey(0)
    params = init_params(key, inDim, hDim, outDim)

    key, kx = jax.random.split(key)
    x_small = jax.random.normal(kx, (8, inDim), dtype=jnp.float32)
    key, kx2 = jax.random.split(key)
    x_big = jax.random.normal(kx2, (300, inDim), dtype=jnp.float32)

    ref_small = reference_forward(params, x_small)
    ref_big = reference_forward(params, x_big)

    # --- f32 weights: exact-path check (tight tolerance) -------------------
    fwd_f32 = make_forward(params, activation=jax.nn.relu,
                           weight_dtype=jnp.float32)
    out_small = jax.block_until_ready(fwd_f32(x_small))
    assert out_small.shape == (8, outDim)
    assert jnp.allclose(out_small, ref_small, atol=1e-5, rtol=1e-5)

    # --- default bf16 weights, f32 accumulation (v5e/v6e/v7x MXU path) -----
    fwd_bf16 = make_forward(params, activation=jax.nn.relu)   # bf16 default
    out_bf16 = jax.block_until_ready(fwd_bf16(x_small))
    assert out_bf16.shape == (8, outDim)
    assert jnp.allclose(out_bf16, ref_small, atol=2e-2, rtol=2e-2)

    # --- B=300: single 304-row block (no 512-row pad overshoot) ------------
    out_big = jax.block_until_ready(fwd_bf16(x_big))
    assert out_big.shape == (300, outDim)
    assert jnp.allclose(out_big, ref_big, atol=2e-2, rtol=2e-2)

    # --- force a multi-block batch grid (3 blocks) to exercise the grid ----
    fwd_multi = make_forward(params, activation=jax.nn.relu,
                             weight_dtype=jnp.float32, block_rows=128)
    out_multi = jax.block_until_ready(fwd_multi(x_big))
    assert out_multi.shape == (300, outDim)
    assert jnp.allclose(out_multi, ref_big, atol=1e-5, rtol=1e-5)

    print("KERNEL_OK")
</pallas_src>

<mosaic_0001>
module attributes {stable_mosaic.version = 11 : i64} {
  func.func @_mlp_kernel(%arg0: i32, %arg1: memref<8x128xf32, #tpu.memory_space<vmem>>, %arg2: memref<128x128xf32, #tpu.memory_space<vmem>>, %arg3: memref<1x128xf32, #tpu.memory_space<vmem>>, %arg4: memref<128x128xf32, #tpu.memory_space<vmem>>, %arg5: memref<1x128xf32, #tpu.memory_space<vmem>>, %arg6: memref<128x128xf32, #tpu.memory_space<vmem>>, %arg7: memref<1x128xf32, #tpu.memory_space<vmem>>, %arg8: memref<8x128xf32, #tpu.memory_space<vmem>>) attributes {dimension_semantics = [#tpu.dimension_semantics<parallel>], iteration_bounds = array<i64: 1>, scalar_prefetch = 0 : i64, scratch_operands = 0 : i64, tpu.core_type = #tpu.core_type<tc>, window_params = [{transform_indices = @transform_0, window_bounds = array<i64: 8, 128>}, {pipeline_mode = #tpu.pipeline_mode<synchronous>, transform_indices = @transform_1, window_bounds = array<i64: 128, 128>}, {pipeline_mode = #tpu.pipeline_mode<synchronous>, transform_indices = @transform_2, window_bounds = array<i64: 1, 128>}, {pipeline_mode = #tpu.pipeline_mode<synchronous>, transform_indices = @transform_3, window_bounds = array<i64: 128, 128>}, {pipeline_mode = #tpu.pipeline_mode<synchronous>, transform_indices = @transform_4, window_bounds = array<i64: 1, 128>}, {pipeline_mode = #tpu.pipeline_mode<synchronous>, transform_indices = @transform_5, window_bounds = array<i64: 128, 128>}, {pipeline_mode = #tpu.pipeline_mode<synchronous>, transform_indices = @transform_6, window_bounds = array<i64: 1, 128>}, {transform_indices = @transform_7, window_bounds = array<i64: 8, 128>}]} {
    %c0 = arith.constant 0 : index
    %c0_0 = arith.constant 0 : index
    %0 = vector.load %arg1[%c0, %c0_0] : memref<8x128xf32, #tpu.memory_space<vmem>>, vector<8x128xf32>
    %c0_1 = arith.constant 0 : index
    %c0_2 = arith.constant 0 : index
    %1 = vector.load %arg2[%c0_1, %c0_2] : memref<128x128xf32, #tpu.memory_space<vmem>>, vector<128x128xf32>
    %cst = arith.constant dense<0.000000e+00> : vector<8x128xf32>
    %2 = tpu.matmul %0, %1, %cst {dimension_numbers = #tpu.dot_dimension_numbers<[1], [0], [0], [1], [0, 0, 1, 1], [], []>} : vector<8x128xf32>, vector<128x128xf32>, vector<8x128xf32> -> vector<8x128xf32>
    %c0_3 = arith.constant 0 : index
    %c0_4 = arith.constant 0 : index
    %3 = vector.load %arg3[%c0_3, %c0_4] : memref<1x128xf32, #tpu.memory_space<vmem>>, vector<1x128xf32>
    %4 = vector.broadcast %3 : vector<1x128xf32> to vector<8x128xf32>
    %5 = arith.addf %2, %4 : vector<8x128xf32>
    %cst_5 = arith.constant 0.000000e+00 : f32
    %6 = vector.broadcast %cst_5 : f32 to vector<8x128xf32>
    %7 = arith.maximumf %5, %6 : vector<8x128xf32>
    %c0_6 = arith.constant 0 : index
    %c0_7 = arith.constant 0 : index
    %8 = vector.load %arg4[%c0_6, %c0_7] : memref<128x128xf32, #tpu.memory_space<vmem>>, vector<128x128xf32>
    %cst_8 = arith.constant dense<0.000000e+00> : vector<8x128xf32>
    %9 = tpu.matmul %7, %8, %cst_8 {dimension_numbers = #tpu.dot_dimension_numbers<[1], [0], [0], [1], [0, 0, 1, 1], [], []>} : vector<8x128xf32>, vector<128x128xf32>, vector<8x128xf32> -> vector<8x128xf32>
    %c0_9 = arith.constant 0 : index
    %c0_10 = arith.constant 0 : index
    %10 = vector.load %arg5[%c0_9, %c0_10] : memref<1x128xf32, #tpu.memory_space<vmem>>, vector<1x128xf32>
    %11 = vector.broadcast %10 : vector<1x128xf32> to vector<8x128xf32>
    %12 = arith.addf %9, %11 : vector<8x128xf32>
    %cst_11 = arith.constant 0.000000e+00 : f32
    %13 = vector.broadcast %cst_11 : f32 to vector<8x128xf32>
    %14 = arith.maximumf %12, %13 : vector<8x128xf32>
    %c0_12 = arith.constant 0 : index
    %c0_13 = arith.constant 0 : index
    %15 = vector.load %arg6[%c0_12, %c0_13] : memref<128x128xf32, #tpu.memory_space<vmem>>, vector<128x128xf32>
    %cst_14 = arith.constant dense<0.000000e+00> : vector<8x128xf32>
    %16 = tpu.matmul %14, %15, %cst_14 {dimension_numbers = #tpu.dot_dimension_numbers<[1], [0], [0], [1], [0, 0, 1, 1], [], []>} : vector<8x128xf32>, vector<128x128xf32>, vector<8x128xf32> -> vector<8x128xf32>
    %c0_15 = arith.constant 0 : index
    %c0_16 = arith.constant 0 : index
    %17 = vector.load %arg7[%c0_15, %c0_16] : memref<1x128xf32, #tpu.memory_space<vmem>>, vector<1x128xf32>
    %18 = vector.broadcast %17 : vector<1x128xf32> to vector<8x128xf32>
    %19 = arith.addf %16, %18 : vector<8x128xf32>
    %c0_17 = arith.constant 0 : index
    %c0_18 = arith.constant 0 : index
    %20 = vector.load %arg8[%c0_17, %c0_18] : memref<8x128xf32, #tpu.memory_space<vmem>>, vector<8x128xf32>
    tpu.vector_store %arg8[%c0_17, %c0_18], %19 {strides = array<i32>} : memref<8x128xf32, #tpu.memory_space<vmem>>, vector<8x128xf32>,
    return
  }
  func.func @transform_0(%arg0: i32) -> (i32, i32) {
    %c0_i32 = arith.constant 0 : i32
    %c0_i32_0 = arith.constant 0 : i32
    return %arg0, %c0_i32 : i32, i32
  }
  func.func @transform_1(%arg0: i32) -> (i32, i32) {
    %c0_i32 = arith.constant 0 : i32
    %c0_i32_0 = arith.constant 0 : i32
    %c0_i32_1 = arith.constant 0 : i32
    return %c0_i32, %c0_i32_0 : i32, i32
  }
  func.func @transform_2(%arg0: i32) -> (i32, i32) {
    %c0_i32 = arith.constant 0 : i32
    %c0_i32_0 = arith.constant 0 : i32
    %c0_i32_1 = arith.constant 0 : i32
    return %c0_i32, %c0_i32_0 : i32, i32
  }
  func.func @transform_3(%arg0: i32) -> (i32, i32) {
    %c0_i32 = arith.constant 0 : i32
    %c0_i32_0 = arith.constant 0 : i32
    %c0_i32_1 = arith.constant 0 : i32
    return %c0_i32, %c0_i32_0 : i32, i32
  }
  func.func @transform_4(%arg0: i32) -> (i32, i32) {
    %c0_i32 = arith.constant 0 : i32
    %c0_i32_0 = arith.constant 0 : i32
    %c0_i32_1 = arith.constant 0 : i32
    return %c0_i32, %c0_i32_0 : i32, i32
  }
  func.func @transform_5(%arg0: i32) -> (i32, i32) {
    %c0_i32 = arith.constant 0 : i32
    %c0_i32_0 = arith.constant 0 : i32
    %c0_i32_1 = arith.constant 0 : i32
    return %c0_i32, %c0_i32_0 : i32, i32
  }
  func.func @transform_6(%arg0: i32) -> (i32, i32) {
    %c0_i32 = arith.constant 0 : i32
    %c0_i32_0 = arith.constant 0 : i32
    %c0_i32_1 = arith.constant 0 : i32
    return %c0_i32, %c0_i32_0 : i32, i32
  }
  func.func @transform_7(%arg0: i32) -> (i32, i32) {
    %c0_i32 = arith.constant 0 : i32
    %c0_i32_0 = arith.constant 0 : i32
    return %arg0, %c0_i32 : i32, i32
  }
}

</mosaic_0001>

<llo_original>
// kernel: _forward.1
$region0: #{_forward.1}
  #allocation0 [shape = 'u32[]', space=smem, size = 0x4, offset = 0x4, fixed_abs, tag = 'smem constant byte address 0x4 - core index']
  #allocation1 [shape = 'u32[72,128]{1,0:T(1,128)}', space=vmem, size = 0x9000, scoped, tag = 'internal scratch']
  %s0 = inlined_call_operand.vmem [shape: f32[8,128], index: 0, kind: input, shape index: {}]
  %s1 = inlined_call_operand.hbm [shape: f32[128,128], index: 1, kind: input, shape index: {}]
  %s2 = inlined_call_operand.vmem [shape: f32[1,128], index: 2, kind: input, shape index: {}]
  %s3 = inlined_call_operand.hbm [shape: f32[128,128], index: 3, kind: input, shape index: {}]
  %s4 = inlined_call_operand.vmem [shape: f32[1,128], index: 4, kind: input, shape index: {}]
  %s5 = inlined_call_operand.hbm [shape: f32[128,128], index: 5, kind: input, shape index: {}]
  %s6 = inlined_call_operand.vmem [shape: f32[1,128], index: 6, kind: input, shape index: {}]
  %s7 = inlined_call_operand.hbm [shape: f32[8,128], index: 7, kind: output, shape index: {}]
  %s8 = sld [smem:[#allocation0]]
  $region50: #{_forward.1} parent=0
    _
  %s10 = ssub.s32 1, %s8
  %s11 = scalar_select 0, %s10, %s8
  $region1: #{_forward.1} parent=0
    #allocation2 [shape = 'u8[65536]{0}', space=vmem, size = 0x10000, scoped, tag = 'input window, operand 1, single buffered']
    #allocation3 [shape = 's32[1]{0}', space=sflag, size = 0x4, scoped, tag = 'scoped memory for _forward.1']
    #allocation4 [shape = 's32[1]{0}', space=sflag, size = 0x4, scoped, tag = 'scoped memory for _forward.1']
    #allocation5 [shape = 'u8[65536]{0}', space=vmem, size = 0x10000, scoped, tag = 'input window, operand 3, single buffered']
    #allocation6 [shape = 's32[1]{0}', space=sflag, size = 0x4, scoped, tag = 'scoped memory for _forward.1']
    #allocation7 [shape = 'u8[65536]{0}', space=vmem, size = 0x10000, scoped, tag = 'input window, operand 5, single buffered']
    #allocation8 [shape = 'u8[4096]{0}', space=vmem, size = 0x1000, scoped, tag = 'output window, operand 0, single buffered']
    %12 = vsyncpa [#allocation3], 0
    %13 = vsyncpa [#allocation6], 0
    %14 = vsyncpa [#allocation4], 0
    // Predicated region
    $region2: #{_forward.1} parent=1 // pred_check
      _
    $region3: #{_forward.1} parent=1 // pred_check_branch
      %16 = sbr.rel (0) target = $region5
    $region4: #{_forward.1} parent=1 // pred_region
      _
    $region5: #{_forward.1} parent=1 // pred_fallthru
      _
    // Predicated region
    $region6: #{_forward.1} parent=1 // pred_check
      _
    $region7: #{_forward.1} parent=1 // pred_check_branch
      %18 = sbr.rel (0) target = $region9
    $region8: #{_forward.1} parent=1 // pred_region
      %20 = vsyncadd [#allocation3], 0
      %s21 = sshll.u32 %s1, 4
      %s22 = int_to_ptr.hbm [resolvable:$true] %s21
      %s23 = sshll.u32 [#allocation2], 4
      %s24 = int_to_ptr.vmem [resolvable:$true] %s23
      %29 = dma.hbm_to_vmem [thread:$0]  %s22, 2048, %s24, [#allocation3], 128, 128, 8
    $region9: #{_forward.1} parent=1 // pred_fallthru
      _
    // Predicated region
    $region10: #{_forward.1} parent=1 // pred_check
      _
    $region11: #{_forward.1} parent=1 // pred_check_branch
      %31 = sbr.rel (0) target = $region13
    $region12: #{_forward.1} parent=1 // pred_region
      _
    $region13: #{_forward.1} parent=1 // pred_fallthru
      _
    // Predicated region
    $region14: #{_forward.1} parent=1 // pred_check
      _
    $region15: #{_forward.1} parent=1 // pred_check_branch
      %33 = sbr.rel (0) target = $region17
    $region16: #{_forward.1} parent=1 // pred_region
      %35 = vsyncadd [#allocation6], 0
      %s36 = sshll.u32 %s3, 4
      %s37 = int_to_ptr.hbm [resolvable:$true] %s36
      %s38 = sshll.u32 [#allocation5], 4
      %s39 = int_to_ptr.vmem [resolvable:$true] %s38
      %44 = dma.hbm_to_vmem [thread:$0]  %s37, 2048, %s39, [#allocation6], 128, 128, 8
    $region17: #{_forward.1} parent=1 // pred_fallthru
      _
    // Predicated region
    $region18: #{_forward.1} parent=1 // pred_check
      _
    $region19: #{_forward.1} parent=1 // pred_check_branch
      %46 = sbr.rel (0) target = $region21
    $region20: #{_forward.1} parent=1 // pred_region
      _
    $region21: #{_forward.1} parent=1 // pred_fallthru
      _
    // Predicated region
    $region22: #{_forward.1} parent=1 // pred_check
      _
    $region23: #{_forward.1} parent=1 // pred_check_branch
      %48 = sbr.rel (0) target = $region25
    $region24: #{_forward.1} parent=1 // pred_region
      %50 = vsyncadd [#allocation6], 0
      %s51 = sshll.u32 %s5, 4
      %s52 = int_to_ptr.hbm [resolvable:$true] %s51
      %s53 = sshll.u32 [#allocation7], 4
      %s54 = int_to_ptr.vmem [resolvable:$true] %s53
      %59 = dma.hbm_to_vmem [thread:$0]  %s52, 2048, %s54, [#allocation6], 128, 128, 8
    $region25: #{_forward.1} parent=1 // pred_fallthru
      _
    // Predicated region
    $region26: #{_forward.1} parent=1 // pred_check
      _
    $region27: #{_forward.1} parent=1 // pred_check_branch
      %61 = sbr.rel (0) target = $region29
    $region28: #{_forward.1} parent=1 // pred_region
      _
    $region29: #{_forward.1} parent=1 // pred_fallthru
      _
    // Predicated region
    $region30: #{_forward.1} parent=1 // pred_check
      _
    $region31: #{_forward.1} parent=1 // pred_check_branch
      %63 = sbr.rel (0) target = $region33
    $region32: #{_forward.1} parent=1 // pred_region
      %65 = dma.done [#allocation3], 2048
    $region33: #{_forward.1} parent=1 // pred_fallthru
      _
    // Predicated region
    $region34: #{_forward.1} parent=1 // pred_check
      _
    $region35: #{_forward.1} parent=1 // pred_check_branch
      %67 = sbr.rel (0) target = $region37
    $region36: #{_forward.1} parent=1 // pred_region
      %69 = dma.done [#allocation6], 2048
    $region37: #{_forward.1} parent=1 // pred_fallthru
      _
    // Predicated region
    $region38: #{_forward.1} parent=1 // pred_check
      _
    $region39: #{_forward.1} parent=1 // pred_check_branch
      %71 = sbr.rel (0) target = $region41
    $region40: #{_forward.1} parent=1 // pred_region
      %73 = dma.done [#allocation6], 2048
    $region41: #{_forward.1} parent=1 // pred_fallthru
      _
    %v74 = vld [vmem:[%s0] sm:$0xff]
    %v75 = vld [vmem:[#allocation2] sm:$0xff]
    %v76 = vld [vmem:[#allocation2 + $0x8] sm:$0xff]
    %v77 = vld [vmem:[#allocation2 + $0x10] sm:$0xff]
    %v78 = vld [vmem:[#allocation2 + $0x18] sm:$0xff]
    %v79 = vld [vmem:[#allocation2 + $0x20] sm:$0xff]
    %v80 = vld [vmem:[#allocation2 + $0x28] sm:$0xff]
    %v81 = vld [vmem:[#allocation2 + $0x30] sm:$0xff]
    %v82 = vld [vmem:[#allocation2 + $0x38] sm:$0xff]
    %v83 = vld [vmem:[#allocation2 + $0x40] sm:$0xff]
    %v84 = vld [vmem:[#allocation2 + $0x48] sm:$0xff]
    %v85 = vld [vmem:[#allocation2 + $0x50] sm:$0xff]
    %v86 = vld [vmem:[#allocation2 + $0x58] sm:$0xff]
    %v87 = vld [vmem:[#allocation2 + $0x60] sm:$0xff]
    %v88 = vld [vmem:[#allocation2 + $0x68] sm:$0xff]
    %v89 = vld [vmem:[#allocation2 + $0x70] sm:$0xff]
    %v90 = vld [vmem:[#allocation2 + $0x78] sm:$0xff]
    %v91 = vld [vmem:[%s2] sm:$0x1]
    %v93 = vperm.slane %v91, 0
    %95 = vmatpush.msra.mxu0 %v90
    %96 = vmatpush.msra.mxu0 %v89
    %97 = vmatpush.msra.mxu0 %v88
    %98 = vmatpush.msra.mxu0 %v87
    %99 = vmatpush.msra.mxu0 %v86
    %100 = vmatpush.msra.mxu0 %v85
    %101 = vmatpush.msra.mxu0 %v84
    %102 = vmatpush.msra.mxu0 %v83
    %103 = vmatpush.msra.mxu0 %v82
    %104 = vmatpush.msra.mxu0 %v81
    %105 = vmatpush.msra.mxu0 %v80
    %106 = vmatpush.msra.mxu0 %v79
    %107 = vmatpush.msra.mxu0 %v78
    %108 = vmatpush.msra.mxu0 %v77
    %109 = vmatpush.msra.mxu0 %v76
    %110 = vmatpush.msra.mxu0 %v75
    %111 = vmatmul.f32.gmra.mxu0 %v74
    %v112 = vpop.f32.mrf.mxu0
    %v113 = vadd.f32 %v93, %v112
    %114 = vdwg.mxu0
    %v115 = vmax.f32 %v113, 0.0
    %v116 = vld [vmem:[#allocation5] sm:$0xff]
    %v117 = vld [vmem:[#allocation5 + $0x8] sm:$0xff]
    %v118 = vld [vmem:[#allocation5 + $0x10] sm:$0xff]
    %v119 = vld [vmem:[#allocation5 + $0x18] sm:$0xff]
    %v120 = vld [vmem:[#allocation5 + $0x20] sm:$0xff]
    %v121 = vld [vmem:[#allocation5 + $0x28] sm:$0xff]
    %v122 = vld [vmem:[#allocation5 + $0x30] sm:$0xff]
    %v123 = vld [vmem:[#allocation5 + $0x38] sm:$0xff]
    %v124 = vld [vmem:[#allocation5 + $0x40] sm:$0xff]
    %v125 = vld [vmem:[#allocation5 + $0x48] sm:$0xff]
    %v126 = vld [vmem:[#allocation5 + $0x50] sm:$0xff]
    %v127 = vld [vmem:[#allocation5 + $0x58] sm:$0xff]
    %v128 = vld [vmem:[#allocation5 + $0x60] sm:$0xff]
    %v129 = vld [vmem:[#allocation5 + $0x68] sm:$0xff]
    %v130 = vld [vmem:[#allocation5 + $0x70] sm:$0xff]
    %v131 = vld [vmem:[#allocation5 + $0x78] sm:$0xff]
    %v132 = vld [vmem:[%s4] sm:$0x1]
    %v134 = vperm.slane %v132, 0
    %136 = vmatpush.msra.mxu0 %v131
    %137 = vmatpush.msra.mxu0 %v130
    %138 = vmatpush.msra.mxu0 %v129
    %139 = vmatpush.msra.mxu0 %v128
    %140 = vmatpush.msra.mxu0 %v127
    %141 = vmatpush.msra.mxu0 %v126
    %142 = vmatpush.msra.mxu0 %v125
    %143 = vmatpush.msra.mxu0 %v124
    %144 = vmatpush.msra.mxu0 %v123
    %145 = vmatpush.msra.mxu0 %v122
    %146 = vmatpush.msra.mxu0 %v121
    %147 = vmatpush.msra.mxu0 %v120
    %148 = vmatpush.msra.mxu0 %v119
    %149 = vmatpush.msra.mxu0 %v118
    %150 = vmatpush.msra.mxu0 %v117
    %151 = vmatpush.msra.mxu0 %v116
    %152 = vmatmul.f32.gmra.mxu0 %v115
    %v153 = vpop.f32.mrf.mxu0
    %v154 = vadd.f32 %v134, %v153
    %155 = vdwg.mxu0
    %v156 = vmax.f32 %v154, 0.0
    %v157 = vld [vmem:[#allocation7] sm:$0xff]
    %v158 = vld [vmem:[#allocation7 + $0x8] sm:$0xff]
    %v159 = vld [vmem:[#allocation7 + $0x10] sm:$0xff]
    %v160 = vld [vmem:[#allocation7 + $0x18] sm:$0xff]
    %v161 = vld [vmem:[#allocation7 + $0x20] sm:$0xff]
    %v162 = vld [vmem:[#allocation7 + $0x28] sm:$0xff]
    %v163 = vld [vmem:[#allocation7 + $0x30] sm:$0xff]
    %v164 = vld [vmem:[#allocation7 + $0x38] sm:$0xff]
    %v165 = vld [vmem:[#allocation7 + $0x40] sm:$0xff]
    %v166 = vld [vmem:[#allocation7 + $0x48] sm:$0xff]
    %v167 = vld [vmem:[#allocation7 + $0x50] sm:$0xff]
    %v168 = vld [vmem:[#allocation7 + $0x58] sm:$0xff]
    %v169 = vld [vmem:[#allocation7 + $0x60] sm:$0xff]
    %v170 = vld [vmem:[#allocation7 + $0x68] sm:$0xff]
    %v171 = vld [vmem:[#allocation7 + $0x70] sm:$0xff]
    %v172 = vld [vmem:[#allocation7 + $0x78] sm:$0xff]
    %v173 = vld [vmem:[%s6] sm:$0x1]
    %v175 = vperm.slane %v173, 0
    %177 = vmatpush.msra.mxu0 %v172
    %178 = vmatpush.msra.mxu0 %v171
    %179 = vmatpush.msra.mxu0 %v170
    %180 = vmatpush.msra.mxu0 %v169
    %181 = vmatpush.msra.mxu0 %v168
    %182 = vmatpush.msra.mxu0 %v167
    %183 = vmatpush.msra.mxu0 %v166
    %184 = vmatpush.msra.mxu0 %v165
    %185 = vmatpush.msra.mxu0 %v164
    %186 = vmatpush.msra.mxu0 %v163
    %187 = vmatpush.msra.mxu0 %v162
    %188 = vmatpush.msra.mxu0 %v161
    %189 = vmatpush.msra.mxu0 %v160
    %190 = vmatpush.msra.mxu0 %v159
    %191 = vmatpush.msra.mxu0 %v158
    %192 = vmatpush.msra.mxu0 %v157
    %193 = vmatmul.f32.gmra.mxu0 %v156
    %v194 = vpop.f32.mrf.mxu0
    %v195 = vadd.f32 %v175, %v194
    %196 = vdwg.mxu0
    %197 = vst [vmem:[#allocation8] sm:$0xff] %v195
    // Predicated region
    $region42: #{_forward.1} parent=1 // pred_check
      _
    $region43: #{_forward.1} parent=1 // pred_check_branch
      %199 = sbr.rel (0) target = $region45
    $region44: #{_forward.1} parent=1 // pred_region
      %201 = vsyncadd [#allocation4], 0
      %s203 = sshll.u32 [#allocation8], 4
      %s204 = int_to_ptr.vmem [resolvable:$true] %s203
      %s205 = sshll.u32 %s7, 4
      %s206 = int_to_ptr.hbm [resolvable:$true] %s205
      %208 = dma.vmem_to_hbm [thread:$0]  %s204, 128, %s206, [#allocation4]
    $region45: #{_forward.1} parent=1 // pred_fallthru
      _
    // Predicated region
    $region46: #{_forward.1} parent=1 // pred_check
      _
    $region47: #{_forward.1} parent=1 // pred_check_branch
      %210 = sbr.rel (0) target = $region49
    $region48: #{_forward.1} parent=1 // pred_region
      %212 = dma.done [#allocation4], 128
    $region49: #{_forward.1} parent=1 // pred_fallthru
      _
    %213 = vsyncpa [#allocation3], 1
    %214 = vsyncpa [#allocation6], 1
    %215 = vsyncpa [#allocation4], 1

</llo_original>
